<compile_context>
chip_gen: v5e
topology: v5e:2x2
jax: 0.10.0
libtpu: 0.0.40
codegen_flags: <defaults>
</compile_context>

<pallas_src>
import math

import jax
import jax.numpy as jnp
from jax.experimental import pallas as pl
from jax.experimental.pallas import tpu as pltpu


def _round_up(x, m):
    return ((x + m - 1) // m) * m


# ----------------------------------------------------------------------------
# Pallas kernel: Linear -> tanh-gelu -> Linear on one batch tile.
# ----------------------------------------------------------------------------
def _head_kernel(x_ref, w1_ref, b1_ref, w2t_ref, b2t_ref, out_ref):
    # x_ref:   (TB, E)   bf16      w1_ref:  (E, Hp)  bf16     b1_ref:  (1, Hp) f32
    # w2t_ref: (Op, Hp)  bf16      b2t_ref: (Op, 1)  f32      out_ref: (Op, TB) f32
    x = x_ref[...]                                                    # bf16

    # Linear 1 — bf16 operands, f32 accumulation on the MXU.
    h = jnp.dot(x, w1_ref[...], preferred_element_type=jnp.float32) + b1_ref[...]

    # gelu (tanh approximation, identical to the PyTorch `gelu` module), in f32.
    c = math.sqrt(2.0 / math.pi)
    cdf = 0.5 * (1.0 + jnp.tanh(c * (h + 0.044715 * (h * h * h))))
    hb = (h * cdf).astype(jnp.bfloat16)                               # (TB, Hp) bf16

    # Linear 2, transposed: o^T = w2^T @ h^T (NT contraction over Hp) so the
    # output keeps batch on the lane axis (lane-dense store, small slab).
    ot = jax.lax.dot_general(
        w2t_ref[...], hb,
        dimension_numbers=(((1,), (1,)), ((), ())),
        preferred_element_type=jnp.float32)                           # (Op, TB)
    out_ref[...] = ot + b2t_ref[...]


def _pick_tb(B, block_b):
    # Small batch: one full block (block == full array dims, so no (8,128)
    # divisibility requirement).  Otherwise a multiple-of-128 tile (batch sits
    # on the lane axis of the transposed output), sized for >=2 grid steps so
    # both v7x TensorCores get work.
    if B <= 128:
        return B
    return min(block_b, _round_up(pl.cdiv(B, 2), 128))


def prepare_head_params(params):
    """One-time (load-time) weight prep: bf16 cast, hidden pad to a multiple of
    128, and transposed/padded second layer for the lane-dense kernel output."""
    w1, b1, w2, b2 = params["w1"], params["b1"], params["w2"], params["b2"]
    E, H = w1.shape
    O = w2.shape[1]
    Hp = _round_up(H, 128)           # full-lane hidden dim for MXU/VPU
    Op = _round_up(O, 8)             # sublane-padded output rows
    w1_p = jnp.zeros((E, Hp), jnp.bfloat16).at[:, :H].set(w1.astype(jnp.bfloat16))
    b1_p = jnp.zeros((1, Hp), jnp.float32).at[:, :H].set(
        b1.astype(jnp.float32).reshape(1, H))
    w2t_p = jnp.zeros((Op, Hp), jnp.bfloat16).at[:O, :H].set(w2.T.astype(jnp.bfloat16))
    b2t_p = jnp.zeros((Op, 1), jnp.float32).at[:O, :].set(
        b2.astype(jnp.float32).reshape(O, 1))
    return {"w1": w1_p, "b1": b1_p, "w2t": w2t_p, "b2t": b2t_p,
            "emb_size": E, "out_size": O}


def muti_label_head(x_cls, head, *, block_b=512):
    """x_cls: (B, E) CLS embeddings (any float dtype); returns (B, out_size) f32."""
    B, E = x_cls.shape
    w1, b1, w2t, b2t = head["w1"], head["b1"], head["w2t"], head["b2t"]
    O = head["out_size"]
    Hp = w1.shape[1]
    Op = w2t.shape[0]
    assert head["emb_size"] == E and E % 128 == 0
    assert block_b % 128 == 0

    TB = _pick_tb(B, block_b)
    grid = pl.cdiv(B, TB)
    x_b = x_cls.astype(jnp.bfloat16)   # no-op if the encoder already emits bf16

    out_t = pl.pallas_call(
        _head_kernel,
        out_shape=jax.ShapeDtypeStruct((Op, B), jnp.float32),
        grid=(grid,),
        in_specs=[
            pl.BlockSpec((TB, E), lambda i: (i, 0)),    # activations: tiled over batch
            pl.BlockSpec((E, Hp), lambda i: (0, 0)),    # weights: constant blocks,
            pl.BlockSpec((1, Hp), lambda i: (0, 0)),    #   stay VMEM-resident
            pl.BlockSpec((Op, Hp), lambda i: (0, 0)),
            pl.BlockSpec((Op, 1), lambda i: (0, 0)),
        ],
        out_specs=pl.BlockSpec((Op, TB), lambda i: (0, i)),
        compiler_params=pltpu.CompilerParams(
            dimension_semantics=("parallel",)),
        # TB<=512 keeps VMEM use far under the 16 MiB v5e default scoped limit;
        # pass vmem_limit_bytes here only if block_b is pushed beyond ~4096.
    )(x_b, w1, b1, w2t, b2t)
    return out_t[:O, :].T                               # (B, out_size) f32


# ----------------------------------------------------------------------------
# Glue: synthetic encoder + deterministic parameter init (plain JAX).
# ----------------------------------------------------------------------------
# TODO(synk): `encoder` is an injected dependency in the PyTorch module; a
# deterministic embedding-lookup stand-in (token emb + segment emb -> tanh) is
# used, evaluated only at cls_loc (only the CLS token feeds the head), and it
# emits bf16 directly so the head kernel needs no extra cast/copy.
def synthetic_encoder_cls(inp, seg, tok_emb, seg_emb, cls_loc=0):
    tok = jnp.take(tok_emb, inp[:, cls_loc], axis=0)
    sgm = jnp.take(seg_emb, seg[:, cls_loc], axis=0)
    return jnp.tanh(tok + sgm).astype(jnp.bfloat16)     # (B, E) — CLS hidden state


def muti_label_model_forward(inp, seg, params, head, cls_loc=0):
    x_cls = synthetic_encoder_cls(inp, seg, params["tok_emb"], params["seg_emb"], cls_loc)
    return muti_label_head(x_cls, head)


def init_params(key, vocab=64, n_seg=2, emb_size=128, out_size=5):
    hidden = emb_size // 2
    ks = jax.random.split(key, 6)
    s_emb = 1.0 / math.sqrt(emb_size)
    s_hid = 1.0 / math.sqrt(hidden)
    return {
        "tok_emb": jax.random.normal(ks[0], (vocab, emb_size), jnp.float32) * 0.02,
        "seg_emb": jax.random.normal(ks[1], (n_seg, emb_size), jnp.float32) * 0.02,
        "w1": jax.random.uniform(ks[2], (emb_size, hidden), jnp.float32, -s_emb, s_emb),
        "b1": jax.random.uniform(ks[3], (hidden,), jnp.float32, -s_emb, s_emb),
        "w2": jax.random.uniform(ks[4], (hidden, out_size), jnp.float32, -s_hid, s_hid),
        "b2": jax.random.uniform(ks[5], (out_size,), jnp.float32, -s_hid, s_hid),
    }


def _head_ref(x_cls_f32, params, bf16_boundaries=True):
    """Plain-JAX reference; bf16_boundaries matches the kernel's cast points."""
    c = math.sqrt(2.0 / math.pi)
    if bf16_boundaries:
        x = x_cls_f32.astype(jnp.bfloat16)
        w1 = params["w1"].astype(jnp.bfloat16)
        w2 = params["w2"].astype(jnp.bfloat16)
    else:
        x, w1, w2 = x_cls_f32, params["w1"], params["w2"]
    h = jnp.dot(x, w1, preferred_element_type=jnp.float32) + params["b1"]
    h = h * (0.5 * (1.0 + jnp.tanh(c * (h + 0.044715 * h * h * h))))
    if bf16_boundaries:
        h = h.astype(jnp.bfloat16)
    return jnp.dot(h, w2, preferred_element_type=jnp.float32) + params["b2"]


if __name__ == "__main__":
    # small, deterministic example shapes
    B, S, VOCAB, EMB, OUT = 2, 8, 64, 128, 5
    key = jax.random.PRNGKey(0)
    k_p, k_inp, k_seg, k_x2 = jax.random.split(key, 4)

    params = init_params(k_p, vocab=VOCAB, emb_size=EMB, out_size=OUT)
    head = prepare_head_params(params)          # one-time weight prep (load time)

    inp = jax.random.randint(k_inp, (B, S), 0, VOCAB, dtype=jnp.int32)
    seg = jax.random.randint(k_seg, (B, S), 0, 2, dtype=jnp.int32)

    out = muti_label_model_forward(inp, seg, params, head, cls_loc=0)
    out = jax.block_until_ready(out)
    assert out.shape == (B, OUT)

    # Tight check vs. a JAX reference with identical bf16 matmul boundaries.
    x_cls = synthetic_encoder_cls(inp, seg, params["tok_emb"], params["seg_emb"], 0)
    x_cls_f32 = x_cls.astype(jnp.float32)
    ref_bf16 = _head_ref(x_cls_f32, params, bf16_boundaries=True)
    assert jnp.allclose(out, ref_bf16, atol=1e-3, rtol=1e-3)

    # Loose sanity check vs. the pure-f32 PyTorch-equivalent math.
    ref_f32 = _head_ref(x_cls_f32, params, bf16_boundaries=False)
    assert jnp.allclose(out, ref_f32, atol=5e-2, rtol=5e-2)

    # Second run: larger batch exercising >=2 grid steps and a ragged last tile.
    B2 = 200
    x2 = (jax.random.normal(k_x2, (B2, EMB), jnp.float32) * 0.1).astype(jnp.bfloat16)
    out2 = jax.block_until_ready(muti_label_head(x2, head, block_b=128))
    ref2 = _head_ref(x2.astype(jnp.float32), params, bf16_boundaries=True)
    assert out2.shape == (B2, OUT)
    assert jnp.allclose(out2, ref2, atol=1e-3, rtol=1e-3)

    print("KERNEL_OK")
</pallas_src>

<mosaic_0001>
module attributes {stable_mosaic.version = 11 : i64} {
  func.func @_head_kernel(%arg0: i32, %arg1: memref<2x128xbf16, #tpu.memory_space<vmem>>, %arg2: memref<128x128xbf16, #tpu.memory_space<vmem>>, %arg3: memref<1x128xf32, #tpu.memory_space<vmem>>, %arg4: memref<8x128xbf16, #tpu.memory_space<vmem>>, %arg5: memref<8x1xf32, #tpu.memory_space<vmem>>, %arg6: memref<8x2xf32, #tpu.memory_space<vmem>>) attributes {dimension_semantics = [#tpu.dimension_semantics<parallel>], iteration_bounds = array<i64: 1>, scalar_prefetch = 0 : i64, scratch_operands = 0 : i64, tpu.core_type = #tpu.core_type<tc>, window_params = [{transform_indices = @transform_0, window_bounds = array<i64: 2, 128>}, {pipeline_mode = #tpu.pipeline_mode<synchronous>, transform_indices = @transform_1, window_bounds = array<i64: 128, 128>}, {pipeline_mode = #tpu.pipeline_mode<synchronous>, transform_indices = @transform_2, window_bounds = array<i64: 1, 128>}, {pipeline_mode = #tpu.pipeline_mode<synchronous>, transform_indices = @transform_3, window_bounds = array<i64: 8, 128>}, {pipeline_mode = #tpu.pipeline_mode<synchronous>, transform_indices = @transform_4, window_bounds = array<i64: 8, 1>}, {transform_indices = @transform_5, window_bounds = array<i64: 8, 2>}]} {
    %c0 = arith.constant 0 : index
    %c0_0 = arith.constant 0 : index
    %0 = vector.load %arg1[%c0, %c0_0] : memref<2x128xbf16, #tpu.memory_space<vmem>>, vector<2x128xbf16>
    %c0_1 = arith.constant 0 : index
    %c0_2 = arith.constant 0 : index
    %1 = vector.load %arg2[%c0_1, %c0_2] : memref<128x128xbf16, #tpu.memory_space<vmem>>, vector<128x128xbf16>
    %cst = arith.constant dense<0.000000e+00> : vector<2x128xf32>
    %2 = tpu.matmul %0, %1, %cst {dimension_numbers = #tpu.dot_dimension_numbers<[1], [0], [0], [1], [0, 0, 1, 1], [], []>} : vector<2x128xbf16>, vector<128x128xbf16>, vector<2x128xf32> -> vector<2x128xf32>
    %c0_3 = arith.constant 0 : index
    %c0_4 = arith.constant 0 : index
    %3 = vector.load %arg3[%c0_3, %c0_4] : memref<1x128xf32, #tpu.memory_space<vmem>>, vector<1x128xf32>
    %4 = vector.broadcast %3 : vector<1x128xf32> to vector<2x128xf32>
    %5 = arith.addf %2, %4 : vector<2x128xf32>
    %6 = arith.mulf %5, %5 : vector<2x128xf32>
    %7 = arith.mulf %6, %5 : vector<2x128xf32>
    %cst_5 = arith.constant 4.471500e-02 : f32
    %8 = vector.broadcast %cst_5 : f32 to vector<2x128xf32>
    %9 = arith.mulf %8, %7 : vector<2x128xf32>
    %10 = arith.addf %5, %9 : vector<2x128xf32>
    %cst_6 = arith.constant 0.797884583 : f32
    %11 = vector.broadcast %cst_6 : f32 to vector<2x128xf32>
    %12 = arith.mulf %11, %10 : vector<2x128xf32>
    %13 = math.tanh %12 : vector<2x128xf32>
    %cst_7 = arith.constant 1.000000e+00 : f32
    %14 = vector.broadcast %cst_7 : f32 to vector<2x128xf32>
    %15 = arith.addf %14, %13 : vector<2x128xf32>
    %cst_8 = arith.constant 5.000000e-01 : f32
    %16 = vector.broadcast %cst_8 : f32 to vector<2x128xf32>
    %17 = arith.mulf %16, %15 : vector<2x128xf32>
    %18 = arith.mulf %5, %17 : vector<2x128xf32>
    %19 = arith.truncf %18 : vector<2x128xf32> to vector<2x128xbf16>
    %c0_9 = arith.constant 0 : index
    %c0_10 = arith.constant 0 : index
    %20 = vector.load %arg4[%c0_9, %c0_10] : memref<8x128xbf16, #tpu.memory_space<vmem>>, vector<8x128xbf16>
    %cst_11 = arith.constant dense<0.000000e+00> : vector<8x2xf32>
    %21 = tpu.matmul %20, %19, %cst_11 {dimension_numbers = #tpu.dot_dimension_numbers<[1], [1], [0], [0], [0, 0, 1, 0], [], []>} : vector<8x128xbf16>, vector<2x128xbf16>, vector<8x2xf32> -> vector<8x2xf32>
    %c0_12 = arith.constant 0 : index
    %c0_13 = arith.constant 0 : index
    %22 = vector.load %arg5[%c0_12, %c0_13] : memref<8x1xf32, #tpu.memory_space<vmem>>, vector<8x1xf32>
    %23 = vector.broadcast %22 : vector<8x1xf32> to vector<8x2xf32>
    %24 = arith.addf %21, %23 : vector<8x2xf32>
    %c0_14 = arith.constant 0 : index
    %c0_15 = arith.constant 0 : index
    %25 = vector.load %arg6[%c0_14, %c0_15] : memref<8x2xf32, #tpu.memory_space<vmem>>, vector<8x2xf32>
    tpu.vector_store %arg6[%c0_14, %c0_15], %24 {strides = array<i32>} : memref<8x2xf32, #tpu.memory_space<vmem>>, vector<8x2xf32>,
    return
  }
  func.func @transform_0(%arg0: i32) -> (i32, i32) {
    %c0_i32 = arith.constant 0 : i32
    %c0_i32_0 = arith.constant 0 : i32
    return %arg0, %c0_i32 : i32, i32
  }
  func.func @transform_1(%arg0: i32) -> (i32, i32) {
    %c0_i32 = arith.constant 0 : i32
    %c0_i32_0 = arith.constant 0 : i32
    %c0_i32_1 = arith.constant 0 : i32
    return %c0_i32, %c0_i32_0 : i32, i32
  }
  func.func @transform_2(%arg0: i32) -> (i32, i32) {
    %c0_i32 = arith.constant 0 : i32
    %c0_i32_0 = arith.constant 0 : i32
    %c0_i32_1 = arith.constant 0 : i32
    return %c0_i32, %c0_i32_0 : i32, i32
  }
  func.func @transform_3(%arg0: i32) -> (i32, i32) {
    %c0_i32 = arith.constant 0 : i32
    %c0_i32_0 = arith.constant 0 : i32
    %c0_i32_1 = arith.constant 0 : i32
    return %c0_i32, %c0_i32_0 : i32, i32
  }
  func.func @transform_4(%arg0: i32) -> (i32, i32) {
    %c0_i32 = arith.constant 0 : i32
    %c0_i32_0 = arith.constant 0 : i32
    %c0_i32_1 = arith.constant 0 : i32
    return %c0_i32, %c0_i32_0 : i32, i32
  }
  func.func @transform_5(%arg0: i32) -> (i32, i32) {
    %c0_i32 = arith.constant 0 : i32
    %c0_i32_0 = arith.constant 0 : i32
    return %c0_i32, %arg0 : i32, i32
  }
}

</mosaic_0001>

<llo_original>
// kernel: tpu_custom_call.1
$region0: #{tpu_custom_call.1}
  #allocation0 [shape = 'u32[]', space=smem, size = 0x4, offset = 0x4, fixed_abs, tag = 'smem constant byte address 0x4 - core index']
  #allocation1 [shape = 'u32[72,128]{1,0:T(1,128)}', space=vmem, size = 0x9000, scoped, tag = 'internal scratch']
  %s0 = inlined_call_operand.vmem [shape: bf16[2,128], index: 0, kind: input, shape index: {}]
  %s1 = inlined_call_operand.hbm [shape: bf16[128,128], index: 1, kind: input, shape index: {}]
  %s2 = inlined_call_operand.vmem [shape: f32[1,128], index: 2, kind: input, shape index: {}]
  %s3 = inlined_call_operand.vmem [shape: bf16[8,128], index: 3, kind: input, shape index: {}]
  %s4 = inlined_call_operand.vmem [shape: f32[8,1], index: 4, kind: input, shape index: {}]
  %s5 = inlined_call_operand.vmem [shape: f32[8,2], index: 5, kind: output, shape index: {}]
  %s6 = sld [smem:[#allocation0]]
  $region34: #{tpu_custom_call.1} parent=0
    _
  %s8 = ssub.s32 1, %s6
  %s9 = scalar_select 0, %s8, %s6
  $region1: #{tpu_custom_call.1} parent=0
    #allocation2 [shape = 'u8[32768]{0}', space=vmem, size = 0x8000, scoped, tag = 'input window, operand 1, single buffered']
    #allocation3 [shape = 's32[1]{0}', space=sflag, size = 0x4, scoped, tag = 'scoped memory for tpu_custom_call.1']
    %10 = vsyncpa [#allocation3], 0
    // Predicated region
    $region2: #{tpu_custom_call.1} parent=1 // pred_check
      _
    $region3: #{tpu_custom_call.1} parent=1 // pred_check_branch
      %12 = sbr.rel (0) target = $region5
    $region4: #{tpu_custom_call.1} parent=1 // pred_region
      _
    $region5: #{tpu_custom_call.1} parent=1 // pred_fallthru
      _
    // Predicated region
    $region6: #{tpu_custom_call.1} parent=1 // pred_check
      _
    $region7: #{tpu_custom_call.1} parent=1 // pred_check_branch
      %14 = sbr.rel (0) target = $region9
    $region8: #{tpu_custom_call.1} parent=1 // pred_region
      %16 = vsyncadd [#allocation3], 0
      %s17 = sshll.u32 %s1, 4
      %s18 = int_to_ptr.hbm [resolvable:$true] %s17
      %s19 = sshll.u32 [#allocation2], 4
      %s20 = int_to_ptr.vmem [resolvable:$true] %s19
      %25 = dma.hbm_to_vmem [thread:$0]  %s18, 1024, %s20, [#allocation3], 64, 64, 4
    $region9: #{tpu_custom_call.1} parent=1 // pred_fallthru
      _
    // Predicated region
    $region10: #{tpu_custom_call.1} parent=1 // pred_check
      _
    $region11: #{tpu_custom_call.1} parent=1 // pred_check_branch
      %27 = sbr.rel (0) target = $region13
    $region12: #{tpu_custom_call.1} parent=1 // pred_region
      _
    $region13: #{tpu_custom_call.1} parent=1 // pred_fallthru
      _
    // Predicated region
    $region14: #{tpu_custom_call.1} parent=1 // pred_check
      _
    $region15: #{tpu_custom_call.1} parent=1 // pred_check_branch
      %29 = sbr.rel (0) target = $region17
    $region16: #{tpu_custom_call.1} parent=1 // pred_region
      _
    $region17: #{tpu_custom_call.1} parent=1 // pred_fallthru
      _
    // Predicated region
    $region18: #{tpu_custom_call.1} parent=1 // pred_check
      _
    $region19: #{tpu_custom_call.1} parent=1 // pred_check_branch
      %31 = sbr.rel (0) target = $region21
    $region20: #{tpu_custom_call.1} parent=1 // pred_region
      _
    $region21: #{tpu_custom_call.1} parent=1 // pred_fallthru
      _
    // Predicated region
    $region22: #{tpu_custom_call.1} parent=1 // pred_check
      _
    $region23: #{tpu_custom_call.1} parent=1 // pred_check_branch
      %33 = sbr.rel (0) target = $region25
    $region24: #{tpu_custom_call.1} parent=1 // pred_region
      %35 = dma.done [#allocation3], 1024
    $region25: #{tpu_custom_call.1} parent=1 // pred_fallthru
      _
    %v37 = vld [vmem:[%s0] sm:$0x1]
    %v38 = vld [vmem:[#allocation2] sm:$0xf]
    %v39 = vld [vmem:[#allocation2 + $0x4] sm:$0xf]
    %v40 = vld [vmem:[#allocation2 + $0x8] sm:$0xf]
    %v41 = vld [vmem:[#allocation2 + $0xc] sm:$0xf]
    %v42 = vld [vmem:[#allocation2 + $0x10] sm:$0xf]
    %v43 = vld [vmem:[#allocation2 + $0x14] sm:$0xf]
    %v44 = vld [vmem:[#allocation2 + $0x18] sm:$0xf]
    %v45 = vld [vmem:[#allocation2 + $0x1c] sm:$0xf]
    %v46 = vld [vmem:[#allocation2 + $0x20] sm:$0xf]
    %v47 = vld [vmem:[#allocation2 + $0x24] sm:$0xf]
    %v48 = vld [vmem:[#allocation2 + $0x28] sm:$0xf]
    %v49 = vld [vmem:[#allocation2 + $0x2c] sm:$0xf]
    %v50 = vld [vmem:[#allocation2 + $0x30] sm:$0xf]
    %v51 = vld [vmem:[#allocation2 + $0x34] sm:$0xf]
    %v52 = vld [vmem:[#allocation2 + $0x38] sm:$0xf]
    %v53 = vld [vmem:[#allocation2 + $0x3c] sm:$0xf]
    %v54 = vld [vmem:[%s2] sm:$0x1]
    %v56 = vperm.slane %v54, 0
    %v74 = vunpack.c.l.b16 %v38
    %v75 = vunpack.c.l.b16 %v39
    %v76 = vunpack.c.l.b16 %v40
    %v77 = vunpack.c.l.b16 %v41
    %v78 = vunpack.c.l.b16 %v42
    %v79 = vunpack.c.l.b16 %v43
    %v80 = vunpack.c.l.b16 %v44
    %v81 = vunpack.c.l.b16 %v45
    %v82 = vunpack.c.l.b16 %v46
    %v83 = vunpack.c.l.b16 %v47
    %v84 = vunpack.c.l.b16 %v48
    %v85 = vunpack.c.l.b16 %v49
    %v86 = vunpack.c.l.b16 %v50
    %v87 = vunpack.c.l.b16 %v51
    %v88 = vunpack.c.l.b16 %v52
    %v89 = vunpack.c.l.b16 %v53
    %v90 = vpack.c.b16 %v75, %v74
    %v91 = vpack.c.b16 %v77, %v76
    %v92 = vpack.c.b16 %v79, %v78
    %v93 = vpack.c.b16 %v81, %v80
    %v94 = vpack.c.b16 %v83, %v82
    %v95 = vpack.c.b16 %v85, %v84
    %v96 = vpack.c.b16 %v87, %v86
    %v97 = vpack.c.b16 %v89, %v88
    %106 = vmatpush.bf16.msra.mxu0 %v97
    %107 = vmatpush.bf16.msra.mxu0 %v96
    %108 = vmatpush.bf16.msra.mxu0 %v95
    %109 = vmatpush.bf16.msra.mxu0 %v94
    %110 = vmatpush.bf16.msra.mxu0 %v93
    %111 = vmatpush.bf16.msra.mxu0 %v92
    %112 = vmatpush.bf16.msra.mxu0 %v91
    %113 = vmatpush.bf16.msra.mxu0 %v90
    %114 = vmatmul.bf16.gmra.mxu0 %v37
    %v115 = vpop.f32.mrf.mxu0
    %v116 = vadd.f32 %v56, %v115
    %v117 = vpop.f32.mrf.mxu0
    %118 = vdwg.mxu0
    %v119 = vmul.f32 %v116, %v116
    %v120 = vmul.f32 %v119, %v116
    %v121 = vmul.f32 %v120, 0.044715
    %v122 = vadd.f32 %v116, %v121
    %v123 = vmul.f32 %v122, 0.7978846
    %v124 = vtanh.pop %v123
    %v125 = vadd.f32 %v124, 1.0
    %v126 = vmul.f32 %v125, 0.5
    %v127 = vmul.f32 %v116, %v126
    %v128 = vpack.c.bf16 %v127, %v127
    %v129 = vld [vmem:[%s3] sm:$0xf]
    %v130 = vld [vmem:[%s4] sm:$0xff]
    %132 = vset.pattern.permute.xlu0 0
    %133 = vperm.xlu0 %132, %v130
    %v134 = vpop.permute.xlu0 %133
    %136 = vmatpush.bf16.xpose.msra.mxu0 0
    %137 = vmatpush.bf16.xpose.msra.mxu0 0
    %138 = vmatpush.bf16.xpose.msra.mxu0 0
    %139 = vmatpush.bf16.xpose.msra.mxu0 0
    %140 = vmatpush.bf16.xpose.msra.mxu0 0
    %141 = vmatpush.bf16.xpose.msra.mxu0 0
    %142 = vmatpush.bf16.xpose.msra.mxu0 0
    %143 = vmatpush.bf16.xpose.msra.mxu0 %v128
    %144 = vmatmul.bf16.gmra.mxu0 %v129
    %v145 = vpop.f32.mrf.mxu0
    %v146 = vadd.f32 %v134, %v145
    %v147 = vpop.f32.mrf.mxu0
    %148 = vdwg.mxu0
    %vm149 = vcmask 15360
    %150 = vst.msk [vmem:[%s5] sm:$0xff] %vm149, %v146
    // Predicated region
    $region26: #{tpu_custom_call.1} parent=1 // pred_check
      _
    $region27: #{tpu_custom_call.1} parent=1 // pred_check_branch
      %152 = sbr.rel (0) target = $region29
    $region28: #{tpu_custom_call.1} parent=1 // pred_region
      _
    $region29: #{tpu_custom_call.1} parent=1 // pred_fallthru
      _
    // Predicated region
    $region30: #{tpu_custom_call.1} parent=1 // pred_check
      _
    $region31: #{tpu_custom_call.1} parent=1 // pred_check_branch
      %154 = sbr.rel (0) target = $region33
    $region32: #{tpu_custom_call.1} parent=1 // pred_region
      _
    $region33: #{tpu_custom_call.1} parent=1 // pred_fallthru
      _
    %155 = vsyncpa [#allocation3], 1

</llo_original>
